<compile_context>
chip_gen: v6e
topology: v6e:2x2x1
jax: 0.10.0
libtpu: 0.0.40
codegen_flags: <defaults>
</compile_context>

<pallas_src>
import functools
from collections import namedtuple

import jax
import jax.numpy as jnp
from jax.experimental import pallas as pl
from jax.experimental.pallas import tpu as pltpu


# ---------------------------------------------------------------------------
# Kernels
# ---------------------------------------------------------------------------

def _mm_kernel_single_pass(x_ref, w_ref, o_ref):
    """Whole K resident in VMEM: one MXU pass per (tm, tn) output tile."""
    o_ref[...] = jnp.dot(
        x_ref[...], w_ref[...], preferred_element_type=jnp.float32
    ).astype(o_ref.dtype)


def _mm_kernel_ktiled_f32out(x_ref, w_ref, o_ref):
    """K split over grid axis 2; accumulate directly into the f32 output."""
    @pl.when(pl.program_id(2) == 0)
    def _init():
        o_ref[...] = jnp.zeros_like(o_ref)

    o_ref[...] += jnp.dot(
        x_ref[...], w_ref[...], preferred_element_type=jnp.float32
    )


def _mm_kernel_ktiled_scratch(x_ref, w_ref, o_ref, acc_ref):
    """K split over grid axis 2; f32 scratch accumulator, cast on last step."""
    @pl.when(pl.program_id(2) == 0)
    def _init():
        acc_ref[...] = jnp.zeros_like(acc_ref)

    acc_ref[...] += jnp.dot(
        x_ref[...], w_ref[...], preferred_element_type=jnp.float32
    )

    @pl.when(pl.program_id(2) == pl.num_programs(2) - 1)
    def _finalize():
        o_ref[...] = acc_ref[...].astype(o_ref.dtype)


# ---------------------------------------------------------------------------
# Hardware / tiling helpers
# ---------------------------------------------------------------------------

_MN_TILE_CANDIDATES = (2048, 1024, 512, 256, 128)
_K_TILE_MAX = 2048


def _round_up(v, m):
    return ((v + m - 1) // m) * m


def _per_core_vmem_bytes():
    """Physical VMEM per TensorCore.  Dual-TC chips (v7x) may report per-chip
    capacity; clamp to the 64 MiB per-core figure so tiling stays honest."""
    cap = None
    cores = 1
    try:
        info = pltpu.get_tpu_info()
        cap = int(info.vmem_capacity_bytes)
        for attr in ("num_tensorcores", "tensorcores_per_chip",
                     "num_cores", "cores_per_chip"):
            v = getattr(info, attr, None)
            if v:
                cores = int(v)
                break
    except Exception:
        cap = None
    kind = ""
    try:
        kind = str(jax.devices()[0].device_kind).lower()
    except Exception:
        pass
    if cap is None:
        cap = 64 * 1024 * 1024          # conservative fallback (v7x per-TC)
    if cores > 1:
        cap = cap // cores
    if "v7" in kind or "7x" in kind:
        cap = min(cap, 64 * 1024 * 1024)
    return max(16 * 1024 * 1024, min(cap, 128 * 1024 * 1024))


def _tile_options(dim):
    """Candidate (tile, padded_dim) pairs for an output-like dimension,
    largest first, with limited zero-padding waste."""
    opts = []
    if dim <= _MN_TILE_CANDIDATES[0]:
        # Whole dimension as one full-extent block (exempt from (8,128) rule).
        opts.append((dim, dim))
    filtered, fallback = [], None
    for t in _MN_TILE_CANDIDATES:
        if t > dim:
            continue
        padded = _round_up(dim, t)
        waste = padded - dim
        if waste * 8 <= dim:
            filtered.append((t, padded))
        if fallback is None or waste < fallback[1]:
            fallback = (t, waste, padded)
    if filtered:
        opts.extend(filtered)
    elif fallback is not None:
        opts.append((fallback[0], fallback[2]))
    seen, out = set(), []
    for t, p in sorted(opts, key=lambda tp: -tp[0]):
        if t not in seen:
            seen.add(t)
            out.append((t, p))
    return out


def _pick_tk(kp128, tk_cap):
    """K-strip size: multiple of 128, <= tk_cap, minimal K zero-padding.
    Returns (tk, padded_K)."""
    tk_cap = int(max(128, min(tk_cap, kp128)))
    tk_cap = (tk_cap // 128) * 128
    blocks = kp128 // 128
    exact = 128
    for m in range(tk_cap // 128, 0, -1):
        if blocks % m == 0:
            exact = m * 128
            break
    k_steps = -(-kp128 // tk_cap)
    balanced = _round_up(-(-kp128 // k_steps), 128)
    if exact * 2 >= balanced:           # prefer the no-extra-padding choice
        return exact, kp128
    return balanced, k_steps * balanced


_Plan = namedtuple(
    "_Plan",
    "M K N Mp Kp Np tm tn tk k_tiled n_outer x_single w_single "
    "use_scratch_acc out_dtype vmem_limit flops bytes_accessed",
)


def _make_plan(M, K, N, x_dtype, w_dtype, out_dtype, single_buffer=True):
    """Pick tiling, grid ordering and padded shapes (pure host-side ints)."""
    xb = jnp.dtype(x_dtype).itemsize
    wb = jnp.dtype(w_dtype).itemsize
    ob = jnp.dtype(out_dtype).itemsize

    vmem_cap = _per_core_vmem_bytes()
    vmem_limit = int(vmem_cap * 0.8)
    tile_budget = int(vmem_limit * 0.9)   # headroom for compiler scratch

    np_base = _round_up(N, 128)            # lane-dense output / weight columns
    tm_opts = _tile_options(M)
    tn_opts = _tile_options(np_base)

    # ---- single-pass candidates (whole K resident per output tile) ----
    best_sp = None
    for tm, Mp in tm_opts:
        for tn, Np in tn_opts:
            grid_m, grid_n = Mp // tm, Np // tn
            for n_outer in (True, False):
                x_single = single_buffer and ((not n_outer) or grid_m == 1)
                w_single = single_buffer and (n_outer or grid_n == 1)
                vmem = ((1 if w_single else 2) * K * tn * wb
                        + (1 if x_single else 2) * tm * K * xb
                        + 2 * tm * tn * ob)
                if vmem > tile_budget:
                    continue
                x_reads = Mp * K * xb * (grid_n if (n_outer and grid_m > 1) else 1)
                w_reads = K * Np * wb * (grid_m if ((not n_outer) and grid_n > 1) else 1)
                traffic = x_reads + w_reads + Mp * Np * ob
                lead, other = (grid_n, grid_m) if n_outer else (grid_m, grid_n)
                mc_penalty = 1 if (lead == 1 and other > 1) else 0
                key = (traffic, mc_penalty, grid_m * grid_n, -(tm * tn))
                if best_sp is None or key < best_sp[0]:
                    best_sp = (key, (tm, Mp, tn, Np, n_outer,
                                     x_single, w_single, traffic))

    # ---- K-tiled candidates ----
    kp128 = _round_up(K, 128)
    use_scratch = jnp.dtype(out_dtype) != jnp.dtype(jnp.float32)
    best_kt = None
    for tm, Mp in tm_opts:
        for tn, Np in tn_opts:
            fixed = 2 * tm * tn * ob + (tm * tn * 4 if use_scratch else 0)
            per_k = 2 * (tm * xb + tn * wb)      # double-buffered strips per unit tk
            if fixed + per_k * 128 > tile_budget:
                continue
            tk_cap = min((tile_budget - fixed) // per_k, _K_TILE_MAX)
            tk, Kp = _pick_tk(kp128, tk_cap)
            grid_m, grid_n, grid_k = Mp // tm, Np // tn, Kp // tk
            traffic = (Mp * Kp * xb * grid_n
                       + Kp * Np * wb * grid_m
                       + Mp * Np * ob)
            n_outer = (grid_m == 1 and grid_n > 1)   # megacore: >1 axis leads
            key = (traffic, grid_m * grid_n * grid_k, -(tm * tn))
            if best_kt is None or key < best_kt[0]:
                best_kt = (key, (tm, Mp, tn, Np, tk, Kp, n_outer, traffic))

    flops = 2 * M * N * K
    if best_sp is not None and (best_kt is None
                                or best_sp[1][-1] <= best_kt[1][-1]):
        tm, Mp, tn, Np, n_outer, x_single, w_single, traffic = best_sp[1]
        return _Plan(M=M, K=K, N=N, Mp=Mp, Kp=K, Np=Np, tm=tm, tn=tn, tk=K,
                     k_tiled=False, n_outer=n_outer,
                     x_single=x_single, w_single=w_single,
                     use_scratch_acc=False, out_dtype=jnp.dtype(out_dtype),
                     vmem_limit=vmem_limit, flops=flops,
                     bytes_accessed=int(traffic))
    if best_kt is not None:
        tm, Mp, tn, Np, tk, Kp, n_outer, traffic = best_kt[1]
        return _Plan(M=M, K=K, N=N, Mp=Mp, Kp=Kp, Np=Np, tm=tm, tn=tn, tk=tk,
                     k_tiled=True, n_outer=n_outer,
                     x_single=False, w_single=False,
                     use_scratch_acc=use_scratch, out_dtype=jnp.dtype(out_dtype),
                     vmem_limit=vmem_limit, flops=flops,
                     bytes_accessed=int(traffic))
    return None   # nothing fits -> caller falls back to XLA dot


# ---------------------------------------------------------------------------
# pallas_call builder (cached per plan)
# ---------------------------------------------------------------------------

def _block_spec(shape, index_map, single_buffered=False):
    if single_buffered and hasattr(pl, "Buffered"):
        try:
            return pl.BlockSpec(shape, index_map, pipeline_mode=pl.Buffered(1))
        except TypeError:
            pass
    return pl.BlockSpec(shape, index_map)


@functools.lru_cache(maxsize=None)
def _build_matmul(plan):
    tm, tn, tk = plan.tm, plan.tn, plan.tk
    Mp, Kp, Np = plan.Mp, plan.Kp, plan.Np
    grid_m, grid_n = Mp // tm, Np // tn

    if not plan.k_tiled:
        if plan.n_outer:
            grid = (grid_n, grid_m)
            x_map = lambda j, i: (i, 0)
            w_map = lambda j, i: (0, j)
            o_map = lambda j, i: (i, j)
        else:
            grid = (grid_m, grid_n)
            x_map = lambda i, j: (i, 0)
            w_map = lambda i, j: (0, j)
            o_map = lambda i, j: (i, j)
        kernel = _mm_kernel_single_pass
        in_specs = [
            _block_spec((tm, Kp), x_map, single_buffered=plan.x_single),
            _block_spec((Kp, tn), w_map, single_buffered=plan.w_single),
        ]
        out_spec = pl.BlockSpec((tm, tn), o_map)
        scratch_shapes = []
        dim_sem = ("parallel", "parallel")
    else:
        grid_k = Kp // tk
        if plan.n_outer:
            grid = (grid_n, grid_m, grid_k)
            x_map = lambda j, i, k: (i, k)
            w_map = lambda j, i, k: (k, j)
            o_map = lambda j, i, k: (i, j)
        else:
            grid = (grid_m, grid_n, grid_k)
            x_map = lambda i, j, k: (i, k)
            w_map = lambda i, j, k: (k, j)
            o_map = lambda i, j, k: (i, j)
        in_specs = [
            pl.BlockSpec((tm, tk), x_map),
            pl.BlockSpec((tk, tn), w_map),
        ]
        out_spec = pl.BlockSpec((tm, tn), o_map)
        if plan.use_scratch_acc:
            kernel = _mm_kernel_ktiled_scratch
            scratch_shapes = [pltpu.VMEM((tm, tn), jnp.float32)]
        else:
            kernel = _mm_kernel_ktiled_f32out
            scratch_shapes = []
        dim_sem = ("parallel", "parallel", "arbitrary")

    mm = pl.pallas_call(
        kernel,
        out_shape=jax.ShapeDtypeStruct((Mp, Np), plan.out_dtype),
        grid_spec=pltpu.PrefetchScalarGridSpec(
            num_scalar_prefetch=0,
            grid=grid,
            in_specs=in_specs,
            out_specs=out_spec,
            scratch_shapes=scratch_shapes,
        ),
        compiler_params=pltpu.CompilerParams(
            dimension_semantics=dim_sem,
            vmem_limit_bytes=plan.vmem_limit,
        ),
        cost_estimate=pl.CostEstimate(
            flops=plan.flops,
            transcendentals=0,
            bytes_accessed=plan.bytes_accessed,
        ),
    )

    def fn(x, w_padded):
        xp = x
        if (plan.Mp, plan.Kp) != (plan.M, plan.K):
            xp = jnp.pad(x, ((0, plan.Mp - plan.M), (0, plan.Kp - plan.K)))
        out = mm(xp, w_padded)
        if (plan.Mp, plan.Np) != (plan.M, plan.N):
            out = out[:plan.M, :plan.N]
        return out

    return jax.jit(fn)


# ---------------------------------------------------------------------------
# Python wrapper
# ---------------------------------------------------------------------------

_single_buffer_ok = True    # flipped off if pl.Buffered(1) is rejected


def _pad2(a, rows, cols):
    r, c = a.shape
    if (r, c) == (rows, cols):
        return a
    return jnp.pad(a, ((0, rows - r), (0, cols - c)))


def _prep_weight(val, plan, pad_cache):
    key = (plan.Kp, plan.Np, str(jnp.dtype(val.dtype)))
    if pad_cache is not None and key in pad_cache:
        return pad_cache[key]
    wp = _pad2(val, plan.Kp, plan.Np)
    if pad_cache is not None:
        wp = jax.block_until_ready(wp)   # materialize once, off the hot path
        pad_cache[key] = wp
    return wp


def _matmul(x, val, pad_cache=None, use_bf16=False):
    global _single_buffer_ok
    if x.ndim != 2 or val.ndim != 2:
        raise ValueError("torch.mm semantics require 2-D operands")
    M, K = x.shape
    Kv, N = val.shape
    if K != Kv:
        raise ValueError(f"inner dims must match, got {K} vs {Kv}")

    if use_bf16 and x.dtype == jnp.float32:
        x = x.astype(jnp.bfloat16)
    if use_bf16 and val.dtype == jnp.float32:
        val = val.astype(jnp.bfloat16)

    floats = (jnp.issubdtype(x.dtype, jnp.floating)
              and jnp.issubdtype(val.dtype, jnp.floating))
    out_dtype = jnp.dtype(jnp.float32) if use_bf16 else jnp.result_type(x.dtype, val.dtype)

    if M == 0 or N == 0 or K == 0:
        return jnp.zeros((M, N), dtype=out_dtype)
    if not floats:
        # TODO(synk): exact integer torch.mm accumulation has no clean MXU
        # mapping (v7x MXU has no int datapath); defer to XLA for non-floats.
        return jnp.dot(x, val)

    def run(single_buffer):
        plan = _make_plan(M, K, N, x.dtype, val.dtype, out_dtype,
                          single_buffer=single_buffer)
        if plan is None:
            return jnp.dot(x, val,
                           preferred_element_type=jnp.float32).astype(out_dtype)
        wp = _prep_weight(val, plan, pad_cache)
        return _build_matmul(plan)(x, wp)

    if not _single_buffer_ok:
        return run(False)
    try:
        return run(True)
    except Exception:
        # Fallback if single-buffered BlockSpecs are unsupported on this
        # JAX/Mosaic version: re-plan with plain double-buffering.
        _single_buffer_ok = False
        return run(False)


def matmul(x, val, use_bf16=False):
    """Functional form of torch.mm(x, val)."""
    return _matmul(jnp.asarray(x), jnp.asarray(val), use_bf16=use_bf16)


class MatMul:
    """Pallas equivalent of hummingbird's onnx MatMul operator.

    forward(x) == torch.mm(x, self.val).  `use_bf16=True` is an opt-in MXU
    lever (bf16 operands, f32 accumulation and output).
    """

    def __init__(self, val, use_bf16=False):
        val = jnp.asarray(val)
        if use_bf16 and val.dtype == jnp.float32:
            val = val.astype(jnp.bfloat16)
        self.val = val
        self.use_bf16 = use_bf16
        # Pre-padded weight (lane-dense N, K rounded for the K-tiled path) is
        # cached so the pad runs once, not on every forward call.
        self._pad_cache = {}

    def __call__(self, x):
        return _matmul(jnp.asarray(x), self.val,
                       pad_cache=self._pad_cache, use_bf16=self.use_bf16)

    forward = __call__


# ---------------------------------------------------------------------------
# Self-test
# ---------------------------------------------------------------------------

if __name__ == "__main__":
    key = jax.random.PRNGKey(0)
    kx, kw, kx2, kw2 = jax.random.split(key, 4)

    # Small shapes consistent with torch.mm: x (seq=8, hidden=32), val (32, 16)
    x = jax.random.normal(kx, (8, 32), dtype=jnp.float32)
    val = jax.random.normal(kw, (32, 16), dtype=jnp.float32)

    op = MatMul(val)
    out = jax.block_until_ready(op(x))
    ref = x @ val
    assert out.shape == (8, 16)
    assert out.dtype == ref.dtype
    assert jnp.allclose(out, ref, atol=1e-5, rtol=1e-5), "mismatch vs reference"

    # Second call exercises the cached padded weight / compiled kernel.
    out2 = jax.block_until_ready(op(x))
    assert jnp.allclose(out2, ref, atol=1e-5, rtol=1e-5)

    # Functional form on the same shapes.
    out3 = jax.block_until_ready(matmul(x, val))
    assert jnp.allclose(out3, ref, atol=1e-5, rtol=1e-5)

    # Unaligned shapes exercise the padding / lane-dense-N / slicing path.
    x2 = jax.random.normal(kx2, (33, 72), dtype=jnp.float32)
    val2 = jax.random.normal(kw2, (72, 130), dtype=jnp.float32)
    op2 = MatMul(val2)
    out4 = jax.block_until_ready(op2(x2))
    ref2 = jnp.dot(x2, val2, precision=jax.lax.Precision.HIGHEST)
    assert out4.shape == (33, 130)
    assert jnp.allclose(out4, ref2, atol=1e-4, rtol=1e-4), "mismatch (unaligned)"

    print("KERNEL_OK")
</pallas_src>

<mosaic_0001>
module attributes {stable_mosaic.version = 11 : i64} {
  func.func @_mm_kernel_single_pass(%arg0: i32, %arg1: i32, %arg2: memref<8x32xf32, #tpu.memory_space<vmem>>, %arg3: memref<32x128xf32, #tpu.memory_space<vmem>>, %arg4: memref<8x128xf32, #tpu.memory_space<vmem>>) attributes {dimension_semantics = [#tpu.dimension_semantics<parallel>, #tpu.dimension_semantics<parallel>], iteration_bounds = array<i64: 1, 1>, scalar_prefetch = 0 : i64, scratch_operands = 0 : i64, tpu.core_type = #tpu.core_type<tc>, window_params = [{pipeline_mode = #tpu.pipeline_mode<synchronous>, transform_indices = @transform_0, window_bounds = array<i64: 8, 32>}, {pipeline_mode = #tpu.pipeline_mode<synchronous>, transform_indices = @transform_1, window_bounds = array<i64: 32, 128>}, {transform_indices = @transform_2, window_bounds = array<i64: 8, 128>}]} {
    %c0 = arith.constant 0 : index
    %c0_0 = arith.constant 0 : index
    %0 = vector.load %arg2[%c0, %c0_0] : memref<8x32xf32, #tpu.memory_space<vmem>>, vector<8x32xf32>
    %c0_1 = arith.constant 0 : index
    %c0_2 = arith.constant 0 : index
    %1 = vector.load %arg3[%c0_1, %c0_2] : memref<32x128xf32, #tpu.memory_space<vmem>>, vector<32x128xf32>
    %cst = arith.constant dense<0.000000e+00> : vector<8x128xf32>
    %2 = tpu.matmul %0, %1, %cst {dimension_numbers = #tpu.dot_dimension_numbers<[1], [0], [0], [1], [0, 0, 1, 1], [], []>} : vector<8x32xf32>, vector<32x128xf32>, vector<8x128xf32> -> vector<8x128xf32>
    %c0_3 = arith.constant 0 : index
    %c0_4 = arith.constant 0 : index
    %3 = vector.load %arg4[%c0_3, %c0_4] : memref<8x128xf32, #tpu.memory_space<vmem>>, vector<8x128xf32>
    tpu.vector_store %arg4[%c0_3, %c0_4], %2 {strides = array<i32>} : memref<8x128xf32, #tpu.memory_space<vmem>>, vector<8x128xf32>,
    return
  }
  func.func @transform_0(%arg0: i32, %arg1: i32) -> (i32, i32) {
    %c0_i32 = arith.constant 0 : i32
    %c0_i32_0 = arith.constant 0 : i32
    return %arg1, %c0_i32 : i32, i32
  }
  func.func @transform_1(%arg0: i32, %arg1: i32) -> (i32, i32) {
    %c0_i32 = arith.constant 0 : i32
    %c0_i32_0 = arith.constant 0 : i32
    return %c0_i32, %arg0 : i32, i32
  }
  func.func @transform_2(%arg0: i32, %arg1: i32) -> (i32, i32) {
    %c0_i32 = arith.constant 0 : i32
    return %arg1, %arg0 : i32, i32
  }
}

module attributes {stable_mosaic.version = 11 : i64} {
  func.func @_mm_kernel_single_pass(%arg0: i32, %arg1: i32, %arg2: memref<8x32xf32, #tpu.memory_space<vmem>>, %arg3: memref<32x128xf32, #tpu.memory_space<vmem>>, %arg4: memref<8x128xf32, #tpu.memory_space<vmem>>) attributes {dimension_semantics = [#tpu.dimension_semantics<parallel>, #tpu.dimension_semantics<parallel>], iteration_bounds = array<i64: 1, 1>, scalar_prefetch = 0 : i64, scratch_operands = 0 : i64, tpu.core_type = #tpu.core_type<tc>, window_params = [{transform_indices = @transform_0, window_bounds = array<i64: 8, 32>}, {transform_indices = @transform_1, window_bounds = array<i64: 32, 128>}, {transform_indices = @transform_2, window_bounds = array<i64: 8, 128>}]} {
    %c0 = arith.constant 0 : index
    %c0_0 = arith.constant 0 : index
    %0 = vector.load %arg2[%c0, %c0_0] : memref<8x32xf32, #tpu.memory_space<vmem>>, vector<8x32xf32>
    %c0_1 = arith.constant 0 : index
    %c0_2 = arith.constant 0 : index
    %1 = vector.load %arg3[%c0_1, %c0_2] : memref<32x128xf32, #tpu.memory_space<vmem>>, vector<32x128xf32>
    %cst = arith.constant dense<0.000000e+00> : vector<8x128xf32>
    %2 = tpu.matmul %0, %1, %cst {dimension_numbers = #tpu.dot_dimension_numbers<[1], [0], [0], [1], [0, 0, 1, 1], [], []>} : vector<8x32xf32>, vector<32x128xf32>, vector<8x128xf32> -> vector<8x128xf32>
    %c0_3 = arith.constant 0 : index
    %c0_4 = arith.constant 0 : index
    %3 = vector.load %arg4[%c0_3, %c0_4] : memref<8x128xf32, #tpu.memory_space<vmem>>, vector<8x128xf32>
    tpu.vector_store %arg4[%c0_3, %c0_4], %2 {strides = array<i32>} : memref<8x128xf32, #tpu.memory_space<vmem>>, vector<8x128xf32>,
    return
  }
  func.func @transform_0(%arg0: i32, %arg1: i32) -> (i32, i32) {
    %c0_i32 = arith.constant 0 : i32
    %c0_i32_0 = arith.constant 0 : i32
    return %arg1, %c0_i32 : i32, i32
  }
  func.func @transform_1(%arg0: i32, %arg1: i32) -> (i32, i32) {
    %c0_i32 = arith.constant 0 : i32
    %c0_i32_0 = arith.constant 0 : i32
    return %c0_i32, %arg0 : i32, i32
  }
  func.func @transform_2(%arg0: i32, %arg1: i32) -> (i32, i32) {
    %c0_i32 = arith.constant 0 : i32
    return %arg1, %arg0 : i32, i32
  }
}

</mosaic_0001>

<llo_original>
// kernel: fn.1
$region0: #{fn.1}
  #allocation0 [shape = 'u32[]', space=smem, size = 0x4, offset = 0x4, fixed_abs, tag = 'smem constant byte address 0x4 - core index']
  #allocation1 [shape = 'u32[144,128]{1,0:T(1,128)}', space=vmem, size = 0x12000, scoped, tag = 'internal scratch']
  %s0 = inlined_call_operand.hbm [shape: f32[8,32], index: 0, kind: input, shape index: {}]
  %s1 = inlined_call_operand.hbm [shape: f32[32,128], index: 1, kind: input, shape index: {}]
  %s2 = inlined_call_operand.hbm [shape: f32[8,128], index: 2, kind: output, shape index: {}]
  %s3 = sld [smem:[#allocation0]]
  $region26: #{fn.1} parent=0
    _
  %s5 = ssub.s32 1, %s3
  %s6 = scalar_select 0, %s5, %s3
  $region1: #{fn.1} parent=0
    #allocation2 [shape = 'u8[4096]{0}', space=vmem, size = 0x1000, scoped, tag = 'input window, operand 0, single buffered']
    #allocation3 [shape = 's32[1]{0}', space=sflag, size = 0x4, scoped, tag = 'scoped memory for fn.1']
    #allocation4 [shape = 's32[1]{0}', space=sflag, size = 0x4, scoped, tag = 'scoped memory for fn.1']
    #allocation5 [shape = 'u8[16384]{0}', space=vmem, size = 0x4000, scoped, tag = 'input window, operand 1, single buffered']
    #allocation6 [shape = 's32[1]{0}', space=sflag, size = 0x4, scoped, tag = 'scoped memory for fn.1']
    #allocation7 [shape = 'u8[4096]{0}', space=vmem, size = 0x1000, scoped, tag = 'output window, operand 0, single buffered']
    %7 = vsyncpa [#allocation3], 0
    %8 = vsyncpa [#allocation6], 0
    %9 = vsyncpa [#allocation4], 0
    // Predicated region
    $region2: #{fn.1} parent=1 // pred_check
      _
    $region3: #{fn.1} parent=1 // pred_check_branch
      %11 = sbr.rel (0) target = $region5
    $region4: #{fn.1} parent=1 // pred_region
      %s13 = ssub.s32 128, 128
      %14 = vsyncadd [#allocation3], %s13
      %s16 = sshll.u32 [#allocation2], 4
      %s17 = int_to_ptr.vmem [resolvable:$true] %s16
      %19 = dma.hbm_to_vmem [thread:$0]  %s0, 128, %s17, [#allocation3]
    $region5: #{fn.1} parent=1 // pred_fallthru
      _
    // Predicated region
    $region6: #{fn.1} parent=1 // pred_check
      _
    $region7: #{fn.1} parent=1 // pred_check_branch
      %21 = sbr.rel (0) target = $region9
    $region8: #{fn.1} parent=1 // pred_region
      %s23 = ssub.s32 512, 512
      %24 = vsyncadd [#allocation6], %s23
      %s25 = sshll.u32 [#allocation5], 4
      %s26 = int_to_ptr.vmem [resolvable:$true] %s25
      %31 = dma.hbm_to_vmem [thread:$0]  %s1, 512, %s26, [#allocation6], 128, 128, 8
    $region9: #{fn.1} parent=1 // pred_fallthru
      _
    // Predicated region
    $region10: #{fn.1} parent=1 // pred_check
      _
    $region11: #{fn.1} parent=1 // pred_check_branch
      %33 = sbr.rel (0) target = $region13
    $region12: #{fn.1} parent=1 // pred_region
      %34 = dma.done [#allocation3], 128
    $region13: #{fn.1} parent=1 // pred_fallthru
      _
    // Predicated region
    $region14: #{fn.1} parent=1 // pred_check
      _
    $region15: #{fn.1} parent=1 // pred_check_branch
      %36 = sbr.rel (0) target = $region17
    $region16: #{fn.1} parent=1 // pred_region
      %37 = dma.done [#allocation6], 512
    $region17: #{fn.1} parent=1 // pred_fallthru
      _
    %v38 = vld [vmem:[#allocation2] sm:$0xff]
    %v39 = vld [vmem:[#allocation5] sm:$0xff]
    %v40 = vld [vmem:[#allocation5 + $0x8] sm:$0xff]
    %v41 = vld [vmem:[#allocation5 + $0x10] sm:$0xff]
    %v42 = vld [vmem:[#allocation5 + $0x18] sm:$0xff]
    %vm43 = vcmask 261120
    %v45 = vsel %vm43, %v38, 0
    %47 = vmatprep.subr.mxu0 0.0
    %48 = vmatpush1.msra.mxu0 0.0
    %49 = vmatprep.subr.mxu0 0.0
    %50 = vmatpush1.msra.mxu0 0.0
    %51 = vmatprep.subr.mxu0 0.0
    %52 = vmatpush1.msra.mxu0 0.0
    %53 = vmatprep.subr.mxu0 0.0
    %54 = vmatpush1.msra.mxu0 0.0
    %55 = vmatprep.subr.mxu0 0.0
    %56 = vmatpush1.msra.mxu0 0.0
    %57 = vmatprep.subr.mxu0 0.0
    %58 = vmatpush1.msra.mxu0 0.0
    %59 = vmatprep.subr.mxu0 0.0
    %60 = vmatpush1.msra.mxu0 0.0
    %61 = vmatprep.subr.mxu0 0.0
    %62 = vmatpush1.msra.mxu0 0.0
    %63 = vmatprep.subr.mxu0 0.0
    %64 = vmatpush1.msra.mxu0 0.0
    %65 = vmatprep.subr.mxu0 0.0
    %66 = vmatpush1.msra.mxu0 0.0
    %67 = vmatprep.subr.mxu0 0.0
    %68 = vmatpush1.msra.mxu0 0.0
    %69 = vmatprep.subr.mxu0 0.0
    %70 = vmatpush1.msra.mxu0 0.0
    %71 = vmatprep.subr.mxu0 0.0
    %72 = vmatpush1.msra.mxu0 %v42
    %73 = vmatprep.subr.mxu0 0.0
    %74 = vmatpush1.msra.mxu0 %v41
    %75 = vmatprep.subr.mxu0 0.0
    %76 = vmatpush1.msra.mxu0 %v40
    %77 = vmatprep.subr.mxu0 0.0
    %78 = vmatpush1.msra.mxu0 %v39
    %79 = vmatprep.subr.mxu0 0.0
    %80 = vmatpush2.msra.mxu0 0.0
    %81 = vmatprep.subr.mxu0 0.0
    %82 = vmatpush2.msra.mxu0 0.0
    %83 = vmatprep.subr.mxu0 0.0
    %84 = vmatpush2.msra.mxu0 0.0
    %85 = vmatprep.subr.mxu0 0.0
    %86 = vmatpush2.msra.mxu0 0.0
    %87 = vmatprep.subr.mxu0 0.0
    %88 = vmatpush2.msra.mxu0 0.0
    %89 = vmatprep.subr.mxu0 0.0
    %90 = vmatpush2.msra.mxu0 0.0
    %91 = vmatprep.subr.mxu0 0.0
    %92 = vmatpush2.msra.mxu0 0.0
    %93 = vmatprep.subr.mxu0 0.0
    %94 = vmatpush2.msra.mxu0 0.0
    %95 = vmatprep.subr.mxu0 0.0
    %96 = vmatpush2.msra.mxu0 0.0
    %97 = vmatprep.subr.mxu0 0.0
    %98 = vmatpush2.msra.mxu0 0.0
    %99 = vmatprep.subr.mxu0 0.0
    %100 = vmatpush2.msra.mxu0 0.0
    %101 = vmatprep.subr.mxu0 0.0
    %102 = vmatpush2.msra.mxu0 0.0
    %103 = vmatprep.subr.mxu0 0.0
    %104 = vmatpush2.msra.mxu0 0.0
    %105 = vmatprep.subr.mxu0 0.0
    %106 = vmatpush2.msra.mxu0 0.0
    %107 = vmatprep.subr.mxu0 0.0
    %108 = vmatpush2.msra.mxu0 0.0
    %109 = vmatprep.subr.mxu0 0.0
    %110 = vmatpush2.msra.mxu0 0.0
    %111 = vmatprep.mubr.f32.mxu0 0.0
    %112 = vmatmul.mubr.f32.gmra.mxu0 %v45
    %v113 = vpop.f32.mrf.mxu0
    %v114 = vadd.f32 0.0, %v113
    %v115 = vpop.f32.mrf.mxu0
    %116 = vdwg.mxu0
    %117 = vst [vmem:[#allocation7] sm:$0xff] %v114
    // Predicated region
    $region18: #{fn.1} parent=1 // pred_check
      _
    $region19: #{fn.1} parent=1 // pred_check_branch
      %119 = sbr.rel (0) target = $region21
    $region20: #{fn.1} parent=1 // pred_region
      %s121 = ssub.s32 128, 128
      %122 = vsyncadd [#allocation4], %s121
      %s124 = sshll.u32 [#allocation7], 4
      %s125 = int_to_ptr.vmem [resolvable:$true] %s124
      %127 = dma.vmem_to_hbm [thread:$0]  %s125, 128, %s2, [#allocation4]
    $region21: #{fn.1} parent=1 // pred_fallthru
      _
    // Predicated region
    $region22: #{fn.1} parent=1 // pred_check
      _
    $region23: #{fn.1} parent=1 // pred_check_branch
      %129 = sbr.rel (0) target = $region25
    $region24: #{fn.1} parent=1 // pred_region
      %130 = dma.done [#allocation4], 128
    $region25: #{fn.1} parent=1 // pred_fallthru
      _
    %131 = vsyncpa [#allocation3], 1
    %132 = vsyncpa [#allocation6], 1
    %133 = vsyncpa [#allocation4], 1

// kernel: fn.1
$region0: #{fn.1}
  #allocation0 [shape = 'u32[]', space=smem, size = 0x4, offset = 0x4, fixed_abs, tag = 'smem constant byte address 0x4 - core index']
  #allocation1 [shape = 'u32[144,128]{1,0:T(1,128)}', space=vmem, size = 0x12000, scoped, tag = 'internal scratch']
  %s0 = inlined_call_operand.hbm [shape: f32[8,32], index: 0, kind: input, shape index: {}]
  %s1 = inlined_call_operand.hbm [shape: f32[32,128], index: 1, kind: input, shape index: {}]
  %s2 = inlined_call_operand.hbm [shape: f32[8,128], index: 2, kind: output, shape index: {}]
  %s3 = sld [smem:[#allocation0]]
  $region26: #{fn.1} parent=0
    _
  %s5 = ssub.s32 1, %s3
  %s6 = scalar_select 0, %s5, %s3
  $region1: #{fn.1} parent=0
    #allocation2 [shape = 'u8[4096]{0}', space=vmem, size = 0x1000, scoped, tag = 'input window, operand 0, single buffered']
    #allocation3 [shape = 's32[1]{0}', space=sflag, size = 0x4, scoped, tag = 'scoped memory for fn.1']
    #allocation4 [shape = 's32[1]{0}', space=sflag, size = 0x4, scoped, tag = 'scoped memory for fn.1']
    #allocation5 [shape = 'u8[16384]{0}', space=vmem, size = 0x4000, scoped, tag = 'input window, operand 1, single buffered']
    #allocation6 [shape = 's32[1]{0}', space=sflag, size = 0x4, scoped, tag = 'scoped memory for fn.1']
    #allocation7 [shape = 'u8[4096]{0}', space=vmem, size = 0x1000, scoped, tag = 'output window, operand 0, single buffered']
    %7 = vsyncpa [#allocation3], 0
    %8 = vsyncpa [#allocation6], 0
    %9 = vsyncpa [#allocation4], 0
    // Predicated region
    $region2: #{fn.1} parent=1 // pred_check
      _
    $region3: #{fn.1} parent=1 // pred_check_branch
      %11 = sbr.rel (0) target = $region5
    $region4: #{fn.1} parent=1 // pred_region
      %s13 = ssub.s32 128, 128
      %14 = vsyncadd [#allocation3], %s13
      %s16 = sshll.u32 [#allocation2], 4
      %s17 = int_to_ptr.vmem [resolvable:$true] %s16
      %19 = dma.hbm_to_vmem [thread:$0]  %s0, 128, %s17, [#allocation3]
    $region5: #{fn.1} parent=1 // pred_fallthru
      _
    // Predicated region
    $region6: #{fn.1} parent=1 // pred_check
      _
    $region7: #{fn.1} parent=1 // pred_check_branch
      %21 = sbr.rel (0) target = $region9
    $region8: #{fn.1} parent=1 // pred_region
      %s23 = ssub.s32 512, 512
      %24 = vsyncadd [#allocation6], %s23
      %s25 = sshll.u32 [#allocation5], 4
      %s26 = int_to_ptr.vmem [resolvable:$true] %s25
      %31 = dma.hbm_to_vmem [thread:$0]  %s1, 512, %s26, [#allocation6], 128, 128, 8
    $region9: #{fn.1} parent=1 // pred_fallthru
      _
    // Predicated region
    $region10: #{fn.1} parent=1 // pred_check
      _
    $region11: #{fn.1} parent=1 // pred_check_branch
      %33 = sbr.rel (0) target = $region13
    $region12: #{fn.1} parent=1 // pred_region
      %34 = dma.done [#allocation3], 128
    $region13: #{fn.1} parent=1 // pred_fallthru
      _
    // Predicated region
    $region14: #{fn.1} parent=1 // pred_check
      _
    $region15: #{fn.1} parent=1 // pred_check_branch
      %36 = sbr.rel (0) target = $region17
    $region16: #{fn.1} parent=1 // pred_region
      %37 = dma.done [#allocation6], 512
    $region17: #{fn.1} parent=1 // pred_fallthru
      _
    %v38 = vld [vmem:[#allocation2] sm:$0xff]
    %v39 = vld [vmem:[#allocation5] sm:$0xff]
    %v40 = vld [vmem:[#allocation5 + $0x8] sm:$0xff]
    %v41 = vld [vmem:[#allocation5 + $0x10] sm:$0xff]
    %v42 = vld [vmem:[#allocation5 + $0x18] sm:$0xff]
    %vm43 = vcmask 261120
    %v45 = vsel %vm43, %v38, 0
    %47 = vmatprep.subr.mxu0 0.0
    %48 = vmatpush1.msra.mxu0 0.0
    %49 = vmatprep.subr.mxu0 0.0
    %50 = vmatpush1.msra.mxu0 0.0
    %51 = vmatprep.subr.mxu0 0.0
    %52 = vmatpush1.msra.mxu0 0.0
    %53 = vmatprep.subr.mxu0 0.0
    %54 = vmatpush1.msra.mxu0 0.0
    %55 = vmatprep.subr.mxu0 0.0
    %56 = vmatpush1.msra.mxu0 0.0
    %57 = vmatprep.subr.mxu0 0.0
    %58 = vmatpush1.msra.mxu0 0.0
    %59 = vmatprep.subr.mxu0 0.0
    %60 = vmatpush1.msra.mxu0 0.0
    %61 = vmatprep.subr.mxu0 0.0
    %62 = vmatpush1.msra.mxu0 0.0
    %63 = vmatprep.subr.mxu0 0.0
    %64 = vmatpush1.msra.mxu0 0.0
    %65 = vmatprep.subr.mxu0 0.0
    %66 = vmatpush1.msra.mxu0 0.0
    %67 = vmatprep.subr.mxu0 0.0
    %68 = vmatpush1.msra.mxu0 0.0
    %69 = vmatprep.subr.mxu0 0.0
    %70 = vmatpush1.msra.mxu0 0.0
    %71 = vmatprep.subr.mxu0 0.0
    %72 = vmatpush1.msra.mxu0 %v42
    %73 = vmatprep.subr.mxu0 0.0
    %74 = vmatpush1.msra.mxu0 %v41
    %75 = vmatprep.subr.mxu0 0.0
    %76 = vmatpush1.msra.mxu0 %v40
    %77 = vmatprep.subr.mxu0 0.0
    %78 = vmatpush1.msra.mxu0 %v39
    %79 = vmatprep.subr.mxu0 0.0
    %80 = vmatpush2.msra.mxu0 0.0
    %81 = vmatprep.subr.mxu0 0.0
    %82 = vmatpush2.msra.mxu0 0.0
    %83 = vmatprep.subr.mxu0 0.0
    %84 = vmatpush2.msra.mxu0 0.0
    %85 = vmatprep.subr.mxu0 0.0
    %86 = vmatpush2.msra.mxu0 0.0
    %87 = vmatprep.subr.mxu0 0.0
    %88 = vmatpush2.msra.mxu0 0.0
    %89 = vmatprep.subr.mxu0 0.0
    %90 = vmatpush2.msra.mxu0 0.0
    %91 = vmatprep.subr.mxu0 0.0
    %92 = vmatpush2.msra.mxu0 0.0
    %93 = vmatprep.subr.mxu0 0.0
    %94 = vmatpush2.msra.mxu0 0.0
    %95 = vmatprep.subr.mxu0 0.0
    %96 = vmatpush2.msra.mxu0 0.0
    %97 = vmatprep.subr.mxu0 0.0
    %98 = vmatpush2.msra.mxu0 0.0
    %99 = vmatprep.subr.mxu0 0.0
    %100 = vmatpush2.msra.mxu0 0.0
    %101 = vmatprep.subr.mxu0 0.0
    %102 = vmatpush2.msra.mxu0 0.0
    %103 = vmatprep.subr.mxu0 0.0
    %104 = vmatpush2.msra.mxu0 0.0
    %105 = vmatprep.subr.mxu0 0.0
    %106 = vmatpush2.msra.mxu0 0.0
    %107 = vmatprep.subr.mxu0 0.0
    %108 = vmatpush2.msra.mxu0 0.0
    %109 = vmatprep.subr.mxu0 0.0
    %110 = vmatpush2.msra.mxu0 0.0
    %111 = vmatprep.mubr.f32.mxu0 0.0
    %112 = vmatmul.mubr.f32.gmra.mxu0 %v45
    %v113 = vpop.f32.mrf.mxu0
    %v114 = vadd.f32 0.0, %v113
    %v115 = vpop.f32.mrf.mxu0
    %116 = vdwg.mxu0
    %117 = vst [vmem:[#allocation7] sm:$0xff] %v114
    // Predicated region
    $region18: #{fn.1} parent=1 // pred_check
      _
    $region19: #{fn.1} parent=1 // pred_check_branch
      %119 = sbr.rel (0) target = $region21
    $region20: #{fn.1} parent=1 // pred_region
      %s121 = ssub.s32 128, 128
      %122 = vsyncadd [#allocation4], %s121
      %s124 = sshll.u32 [#allocation7], 4
      %s125 = int_to_ptr.vmem [resolvable:$true] %s124
      %127 = dma.vmem_to_hbm [thread:$0]  %s125, 128, %s2, [#allocation4]
    $region21: #{fn.1} parent=1 // pred_fallthru
      _
    // Predicated region
    $region22: #{fn.1} parent=1 // pred_check
      _
    $region23: #{fn.1} parent=1 // pred_check_branch
      %129 = sbr.rel (0) target = $region25
    $region24: #{fn.1} parent=1 // pred_region
      %130 = dma.done [#allocation4], 128
    $region25: #{fn.1} parent=1 // pred_fallthru
      _
    %131 = vsyncpa [#allocation3], 1
    %132 = vsyncpa [#allocation6], 1
    %133 = vsyncpa [#allocation4], 1

</llo_original>
